<compile_context>
chip_gen: v7x
topology: tpu7x:2x2x1
jax: 0.10.0
libtpu: 0.0.40
codegen_flags: <defaults>
</compile_context>

<pallas_src>
import jax
import jax.numpy as jnp
from jax import lax
from jax.experimental import pallas as pl
from jax.experimental.pallas import tpu as pltpu


def rnn_chunk_kernel(x_ref, wih_ref, whh_ref, b_ref, wfc_ref, bfc_ref,
                     out_ref, h_ref, pre_ref):
    """One grid step = one chunk of Tc timesteps.

    x_ref:   (Tc, B, I)  chunk of time-major input
    h_ref:   (B, H)      hidden state carried across grid steps (VMEM scratch)
    pre_ref: (Tc, B, H)  per-chunk input projections (VMEM scratch)
    """
    c = pl.program_id(0)
    n_chunks = pl.num_programs(0)
    Tc, B, I = x_ref.shape
    H = whh_ref.shape[0]
    O = out_ref.shape[1]

    # h0 = zeros (as in the PyTorch module), once at the first chunk.
    @pl.when(c == 0)
    def _():
        h_ref[...] = jnp.zeros_like(h_ref)

    # (1) Chunk input projection off the serial path: ONE MXU matmul for all Tc
    #     timesteps, with the folded RNN bias (b_ih + b_hh) added once.
    x2 = x_ref[...].reshape(Tc * B, I)
    pre = jnp.dot(x2, wih_ref[...], preferred_element_type=jnp.float32) + b_ref[...]
    pre_ref[...] = pre.reshape(Tc, B, H)

    # (2) Serial recurrence: h = tanh(pre_t + h @ W_hh^T).
    whh = whh_ref[...]  # (H, H) resident across the whole chunk

    def step(t, h):
        return jnp.tanh(
            pre_ref[t] + jnp.dot(h, whh, preferred_element_type=jnp.float32)
        )

    h = lax.fori_loop(0, Tc, step, h_ref[...], unroll=min(Tc, 8))
    h_ref[...] = h

    # (3) FC head on the final hidden state, only at the last chunk.
    @pl.when(c == n_chunks - 1)
    def _():
        if O == 1:
            # O = 1: VPU multiply + cross-lane reduce; avoids an MXU push + MRF pop
            # tail for a single-lane result.
            out = jnp.sum(h * wfc_ref[...], axis=-1, keepdims=True) + bfc_ref[...]
        else:
            out = lax.dot_general(
                h, wfc_ref[...], (((1,), (1,)), ((), ())),
                preferred_element_type=jnp.float32) + bfc_ref[...]
        out_ref[...] = out.astype(out_ref.dtype)


def prepare_params(w_ih, w_hh, b_ih, b_hh, w_fc, b_fc):
    """One-time parameter layout prep (canonical stored form; NOT redone per forward)."""
    H = w_ih.shape[0]
    O = w_fc.shape[0]
    return {
        "wih_t": jnp.transpose(w_ih).astype(jnp.float32),          # (I, H)
        "whh_t": jnp.transpose(w_hh).astype(jnp.float32),          # (H, H)
        "b": (b_ih + b_hh).reshape(1, H).astype(jnp.float32),      # folded RNN bias
        "wfc": w_fc.astype(jnp.float32),                           # (O, H)
        "bfc": b_fc.reshape(1, O).astype(jnp.float32),             # (1, O)
    }


def simple_rnn_forward(x_btf, params, *, max_chunk=512):
    """x_btf: (batch, seq, input) — PyTorch batch_first layout."""
    B, T, I = x_btf.shape
    H = params["whh_t"].shape[0]
    O = params["wfc"].shape[0]

    # Tiny layout glue: time-major so per-chunk slices are leading-axis blocks.
    x_tbf = jnp.transpose(x_btf, (1, 0, 2)).astype(jnp.float32)    # (T, B, I)

    # Chunk length: whole sequence when small (single invocation, fully resident);
    # otherwise the largest divisor of T <= max_chunk so x + pre VMEM stays bounded.
    if T <= max_chunk:
        Tc = T
    else:
        Tc = max(d for d in range(1, max_chunk + 1) if T % d == 0)
    n_chunks = T // Tc

    grid_spec = pltpu.PrefetchScalarGridSpec(
        num_scalar_prefetch=0,
        grid=(n_chunks,),
        in_specs=[
            pl.BlockSpec((Tc, B, I), lambda c: (c, 0, 0)),   # x streams chunk-by-chunk
            pl.BlockSpec((I, H), lambda c: (0, 0)),          # W_ih^T resident
            pl.BlockSpec((H, H), lambda c: (0, 0)),          # W_hh^T resident
            pl.BlockSpec((1, H), lambda c: (0, 0)),          # folded RNN bias
            pl.BlockSpec((O, H), lambda c: (0, 0)),          # W_fc resident
            pl.BlockSpec((1, O), lambda c: (0, 0)),          # b_fc
        ],
        out_specs=pl.BlockSpec((B, O), lambda c: (0, 0)),    # same block across grid
        scratch_shapes=[
            pltpu.VMEM((B, H), jnp.float32),       # carried hidden state
            pltpu.VMEM((Tc, B, H), jnp.float32),   # per-chunk input projections
        ],
    )

    return pl.pallas_call(
        rnn_chunk_kernel,
        out_shape=jax.ShapeDtypeStruct((B, O), jnp.float32),
        grid_spec=grid_spec,
        compiler_params=pltpu.CompilerParams(
            dimension_semantics=("arbitrary",)),   # chunks are sequentially dependent
    )(x_tbf, params["wih_t"], params["whh_t"], params["b"],
      params["wfc"], params["bfc"])


def reference_forward(x_btf, w_ih, w_hh, b_ih, b_hh, w_fc, b_fc):
    B, T, I = x_btf.shape
    H = w_ih.shape[0]
    h = jnp.zeros((B, H), jnp.float32)
    for t in range(T):
        h = jnp.tanh(x_btf[:, t, :] @ w_ih.T + b_ih + h @ w_hh.T + b_hh)
    return h @ w_fc.T + b_fc


if __name__ == "__main__":
    # Small shapes consistent with the module: fc maps hidden -> output_size = 1,
    # hidden_size = 50 as in the spec; batch=8 keeps per-step tiles sublane-aligned.
    batch, seq, input_size, hidden_size, output_size = 8, 8, 16, 50, 1

    key = jax.random.PRNGKey(0)
    k_x, k_wih, k_whh, k_bih, k_bhh, k_wfc, k_bfc = jax.random.split(key, 7)

    x = jax.random.normal(k_x, (batch, seq, input_size), jnp.float32)

    s = 1.0 / jnp.sqrt(hidden_size)
    w_ih = jax.random.uniform(k_wih, (hidden_size, input_size), jnp.float32, -s, s)
    w_hh = jax.random.uniform(k_whh, (hidden_size, hidden_size), jnp.float32, -s, s)
    b_ih = jax.random.uniform(k_bih, (hidden_size,), jnp.float32, -s, s)
    b_hh = jax.random.uniform(k_bhh, (hidden_size,), jnp.float32, -s, s)
    w_fc = jax.random.uniform(k_wfc, (output_size, hidden_size), jnp.float32, -s, s)
    b_fc = jax.random.uniform(k_bfc, (output_size,), jnp.float32, -s, s)

    params = prepare_params(w_ih, w_hh, b_ih, b_hh, w_fc, b_fc)
    ref = reference_forward(x, w_ih, w_hh, b_ih, b_hh, w_fc, b_fc)

    # Primary path: whole sequence resident, single kernel invocation (grid=(1,)).
    out = jax.block_until_ready(simple_rnn_forward(x, params))
    assert out.shape == (batch, output_size)
    assert jnp.allclose(out, ref, atol=2e-5, rtol=1e-4)

    # Scalability path: force 2 time-chunks to exercise the carried-hidden-state grid.
    out_chunked = jax.block_until_ready(simple_rnn_forward(x, params, max_chunk=4))
    assert jnp.allclose(out_chunked, ref, atol=2e-5, rtol=1e-4)

    print("KERNEL_OK")
</pallas_src>

<mosaic_0001>
module attributes {stable_mosaic.version = 11 : i64} {
  func.func @rnn_chunk_kernel(%arg0: i32, %arg1: memref<8x8x16xf32, #tpu.memory_space<vmem>>, %arg2: memref<16x50xf32, #tpu.memory_space<vmem>>, %arg3: memref<50x50xf32, #tpu.memory_space<vmem>>, %arg4: memref<1x50xf32, #tpu.memory_space<vmem>>, %arg5: memref<1x50xf32, #tpu.memory_space<vmem>>, %arg6: memref<1x1xf32, #tpu.memory_space<vmem>>, %arg7: memref<8x1xf32, #tpu.memory_space<vmem>>, %arg8: memref<8x50xf32, #tpu.memory_space<vmem>>, %arg9: memref<8x8x50xf32, #tpu.memory_space<vmem>>) attributes {dimension_semantics = [#tpu.dimension_semantics<arbitrary>], iteration_bounds = array<i64: 1>, scalar_prefetch = 0 : i64, scratch_operands = 2 : i64, tpu.core_type = #tpu.core_type<tc>, window_params = [{transform_indices = @transform_0, window_bounds = array<i64: 8, 8, 16>}, {pipeline_mode = #tpu.pipeline_mode<synchronous>, transform_indices = @transform_1, window_bounds = array<i64: 16, 50>}, {pipeline_mode = #tpu.pipeline_mode<synchronous>, transform_indices = @transform_2, window_bounds = array<i64: 50, 50>}, {pipeline_mode = #tpu.pipeline_mode<synchronous>, transform_indices = @transform_3, window_bounds = array<i64: 1, 50>}, {pipeline_mode = #tpu.pipeline_mode<synchronous>, transform_indices = @transform_4, window_bounds = array<i64: 1, 50>}, {pipeline_mode = #tpu.pipeline_mode<synchronous>, transform_indices = @transform_5, window_bounds = array<i64: 1, 1>}, {pipeline_mode = #tpu.pipeline_mode<synchronous>, transform_indices = @transform_6, window_bounds = array<i64: 8, 1>}]} {
    %c0_i32 = arith.constant 0 : i32
    %0 = arith.cmpi eq, %arg0, %c0_i32 : i32
    %1 = arith.extui %0 : i1 to i32
    %c0_i32_0 = arith.constant 0 : i32
    %2 = arith.cmpi ne, %1, %c0_i32_0 : i32
    scf.if %2 {
      %cst_43 = arith.constant 0.000000e+00 : f32
      %66 = vector.broadcast %cst_43 : f32 to vector<8x50xf32>
      %c0_44 = arith.constant 0 : index
      %c0_45 = arith.constant 0 : index
      %67 = vector.load %arg8[%c0_44, %c0_45] : memref<8x50xf32, #tpu.memory_space<vmem>>, vector<8x50xf32>
      tpu.vector_store %arg8[%c0_44, %c0_45], %66 {strides = array<i32>} : memref<8x50xf32, #tpu.memory_space<vmem>>, vector<8x50xf32>,
    } else {
    }
    %c0 = arith.constant 0 : index
    %c0_1 = arith.constant 0 : index
    %c0_2 = arith.constant 0 : index
    %3 = vector.load %arg1[%c0, %c0_1, %c0_2] : memref<8x8x16xf32, #tpu.memory_space<vmem>>, vector<8x8x16xf32>
    %4 = vector.shape_cast %3 : vector<8x8x16xf32> to vector<64x16xf32>
    %c0_3 = arith.constant 0 : index
    %c0_4 = arith.constant 0 : index
    %5 = vector.load %arg2[%c0_3, %c0_4] : memref<16x50xf32, #tpu.memory_space<vmem>>, vector<16x50xf32>
    %cst = arith.constant dense<0.000000e+00> : vector<64x50xf32>
    %6 = tpu.matmul %4, %5, %cst {dimension_numbers = #tpu.dot_dimension_numbers<[1], [0], [0], [1], [0, 0, 1, 1], [], []>} : vector<64x16xf32>, vector<16x50xf32>, vector<64x50xf32> -> vector<64x50xf32>
    %c0_5 = arith.constant 0 : index
    %c0_6 = arith.constant 0 : index
    %7 = vector.load %arg4[%c0_5, %c0_6] : memref<1x50xf32, #tpu.memory_space<vmem>>, vector<1x50xf32>
    %8 = vector.broadcast %7 : vector<1x50xf32> to vector<64x50xf32>
    %9 = arith.addf %6, %8 : vector<64x50xf32>
    %10 = vector.shape_cast %9 : vector<64x50xf32> to vector<8x8x50xf32>
    %c0_7 = arith.constant 0 : index
    %c0_8 = arith.constant 0 : index
    %c0_9 = arith.constant 0 : index
    %11 = vector.load %arg9[%c0_7, %c0_8, %c0_9] : memref<8x8x50xf32, #tpu.memory_space<vmem>>, vector<8x8x50xf32>
    tpu.vector_store %arg9[%c0_7, %c0_8, %c0_9], %10 {strides = array<i32>} : memref<8x8x50xf32, #tpu.memory_space<vmem>>, vector<8x8x50xf32>,
    %c0_10 = arith.constant 0 : index
    %c0_11 = arith.constant 0 : index
    %12 = vector.load %arg3[%c0_10, %c0_11] : memref<50x50xf32, #tpu.memory_space<vmem>>, vector<50x50xf32>
    %c0_12 = arith.constant 0 : index
    %c0_13 = arith.constant 0 : index
    %13 = vector.load %arg8[%c0_12, %c0_13] : memref<8x50xf32, #tpu.memory_space<vmem>>, vector<8x50xf32>
    %c0_i32_14 = arith.constant 0 : i32
    %14 = arith.index_cast %c0_i32_14 : i32 to index
    %c0_15 = arith.constant 0 : index
    %c0_16 = arith.constant 0 : index
    %15 = vector.load %arg9[%14, %c0_15, %c0_16] : memref<8x8x50xf32, #tpu.memory_space<vmem>>, vector<1x8x50xf32>
    %16 = vector.shape_cast %15 : vector<1x8x50xf32> to vector<8x50xf32>
    %cst_17 = arith.constant dense<0.000000e+00> : vector<8x50xf32>
    %17 = tpu.matmul %13, %12, %cst_17 {dimension_numbers = #tpu.dot_dimension_numbers<[1], [0], [0], [1], [0, 0, 1, 1], [], []>} : vector<8x50xf32>, vector<50x50xf32>, vector<8x50xf32> -> vector<8x50xf32>
    %18 = arith.addf %16, %17 : vector<8x50xf32>
    %19 = math.tanh %18 : vector<8x50xf32>
    %c1_i32 = arith.constant 1 : i32
    %20 = arith.index_cast %c1_i32 : i32 to index
    %c0_18 = arith.constant 0 : index
    %c0_19 = arith.constant 0 : index
    %21 = vector.load %arg9[%20, %c0_18, %c0_19] : memref<8x8x50xf32, #tpu.memory_space<vmem>>, vector<1x8x50xf32>
    %22 = vector.shape_cast %21 : vector<1x8x50xf32> to vector<8x50xf32>
    %cst_20 = arith.constant dense<0.000000e+00> : vector<8x50xf32>
    %23 = tpu.matmul %19, %12, %cst_20 {dimension_numbers = #tpu.dot_dimension_numbers<[1], [0], [0], [1], [0, 0, 1, 1], [], []>} : vector<8x50xf32>, vector<50x50xf32>, vector<8x50xf32> -> vector<8x50xf32>
    %24 = arith.addf %22, %23 : vector<8x50xf32>
    %25 = math.tanh %24 : vector<8x50xf32>
    %c2_i32 = arith.constant 2 : i32
    %26 = arith.index_cast %c2_i32 : i32 to index
    %c0_21 = arith.constant 0 : index
    %c0_22 = arith.constant 0 : index
    %27 = vector.load %arg9[%26, %c0_21, %c0_22] : memref<8x8x50xf32, #tpu.memory_space<vmem>>, vector<1x8x50xf32>
    %28 = vector.shape_cast %27 : vector<1x8x50xf32> to vector<8x50xf32>
    %cst_23 = arith.constant dense<0.000000e+00> : vector<8x50xf32>
    %29 = tpu.matmul %25, %12, %cst_23 {dimension_numbers = #tpu.dot_dimension_numbers<[1], [0], [0], [1], [0, 0, 1, 1], [], []>} : vector<8x50xf32>, vector<50x50xf32>, vector<8x50xf32> -> vector<8x50xf32>
    %30 = arith.addf %28, %29 : vector<8x50xf32>
    %31 = math.tanh %30 : vector<8x50xf32>
    %c3_i32 = arith.constant 3 : i32
    %32 = arith.index_cast %c3_i32 : i32 to index
    %c0_24 = arith.constant 0 : index
    %c0_25 = arith.constant 0 : index
    %33 = vector.load %arg9[%32, %c0_24, %c0_25] : memref<8x8x50xf32, #tpu.memory_space<vmem>>, vector<1x8x50xf32>
    %34 = vector.shape_cast %33 : vector<1x8x50xf32> to vector<8x50xf32>
    %cst_26 = arith.constant dense<0.000000e+00> : vector<8x50xf32>
    %35 = tpu.matmul %31, %12, %cst_26 {dimension_numbers = #tpu.dot_dimension_numbers<[1], [0], [0], [1], [0, 0, 1, 1], [], []>} : vector<8x50xf32>, vector<50x50xf32>, vector<8x50xf32> -> vector<8x50xf32>
    %36 = arith.addf %34, %35 : vector<8x50xf32>
    %37 = math.tanh %36 : vector<8x50xf32>
    %c4_i32 = arith.constant 4 : i32
    %38 = arith.index_cast %c4_i32 : i32 to index
    %c0_27 = arith.constant 0 : index
    %c0_28 = arith.constant 0 : index
    %39 = vector.load %arg9[%38, %c0_27, %c0_28] : memref<8x8x50xf32, #tpu.memory_space<vmem>>, vector<1x8x50xf32>
    %40 = vector.shape_cast %39 : vector<1x8x50xf32> to vector<8x50xf32>
    %cst_29 = arith.constant dense<0.000000e+00> : vector<8x50xf32>
    %41 = tpu.matmul %37, %12, %cst_29 {dimension_numbers = #tpu.dot_dimension_numbers<[1], [0], [0], [1], [0, 0, 1, 1], [], []>} : vector<8x50xf32>, vector<50x50xf32>, vector<8x50xf32> -> vector<8x50xf32>
    %42 = arith.addf %40, %41 : vector<8x50xf32>
    %43 = math.tanh %42 : vector<8x50xf32>
    %c5_i32 = arith.constant 5 : i32
    %44 = arith.index_cast %c5_i32 : i32 to index
    %c0_30 = arith.constant 0 : index
    %c0_31 = arith.constant 0 : index
    %45 = vector.load %arg9[%44, %c0_30, %c0_31] : memref<8x8x50xf32, #tpu.memory_space<vmem>>, vector<1x8x50xf32>
    %46 = vector.shape_cast %45 : vector<1x8x50xf32> to vector<8x50xf32>
    %cst_32 = arith.constant dense<0.000000e+00> : vector<8x50xf32>
    %47 = tpu.matmul %43, %12, %cst_32 {dimension_numbers = #tpu.dot_dimension_numbers<[1], [0], [0], [1], [0, 0, 1, 1], [], []>} : vector<8x50xf32>, vector<50x50xf32>, vector<8x50xf32> -> vector<8x50xf32>
    %48 = arith.addf %46, %47 : vector<8x50xf32>
    %49 = math.tanh %48 : vector<8x50xf32>
    %c6_i32 = arith.constant 6 : i32
    %50 = arith.index_cast %c6_i32 : i32 to index
    %c0_33 = arith.constant 0 : index
    %c0_34 = arith.constant 0 : index
    %51 = vector.load %arg9[%50, %c0_33, %c0_34] : memref<8x8x50xf32, #tpu.memory_space<vmem>>, vector<1x8x50xf32>
    %52 = vector.shape_cast %51 : vector<1x8x50xf32> to vector<8x50xf32>
    %cst_35 = arith.constant dense<0.000000e+00> : vector<8x50xf32>
    %53 = tpu.matmul %49, %12, %cst_35 {dimension_numbers = #tpu.dot_dimension_numbers<[1], [0], [0], [1], [0, 0, 1, 1], [], []>} : vector<8x50xf32>, vector<50x50xf32>, vector<8x50xf32> -> vector<8x50xf32>
    %54 = arith.addf %52, %53 : vector<8x50xf32>
    %55 = math.tanh %54 : vector<8x50xf32>
    %c7_i32 = arith.constant 7 : i32
    %56 = arith.index_cast %c7_i32 : i32 to index
    %c0_36 = arith.constant 0 : index
    %c0_37 = arith.constant 0 : index
    %57 = vector.load %arg9[%56, %c0_36, %c0_37] : memref<8x8x50xf32, #tpu.memory_space<vmem>>, vector<1x8x50xf32>
    %58 = vector.shape_cast %57 : vector<1x8x50xf32> to vector<8x50xf32>
    %cst_38 = arith.constant dense<0.000000e+00> : vector<8x50xf32>
    %59 = tpu.matmul %55, %12, %cst_38 {dimension_numbers = #tpu.dot_dimension_numbers<[1], [0], [0], [1], [0, 0, 1, 1], [], []>} : vector<8x50xf32>, vector<50x50xf32>, vector<8x50xf32> -> vector<8x50xf32>
    %60 = arith.addf %58, %59 : vector<8x50xf32>
    %61 = math.tanh %60 : vector<8x50xf32>
    %c8_i32 = arith.constant 8 : i32
    %c0_39 = arith.constant 0 : index
    %c0_40 = arith.constant 0 : index
    %62 = vector.load %arg8[%c0_39, %c0_40] : memref<8x50xf32, #tpu.memory_space<vmem>>, vector<8x50xf32>
    tpu.vector_store %arg8[%c0_39, %c0_40], %61 {strides = array<i32>} : memref<8x50xf32, #tpu.memory_space<vmem>>, vector<8x50xf32>,
    %c0_i32_41 = arith.constant 0 : i32
    %63 = arith.cmpi eq, %arg0, %c0_i32_41 : i32
    %64 = arith.extui %63 : i1 to i32
    %c0_i32_42 = arith.constant 0 : i32
    %65 = arith.cmpi ne, %64, %c0_i32_42 : i32
    scf.if %65 {
      %c0_43 = arith.constant 0 : index
      %c0_44 = arith.constant 0 : index
      %66 = vector.load %arg5[%c0_43, %c0_44] : memref<1x50xf32, #tpu.memory_space<vmem>>, vector<1x50xf32>
      %67 = vector.broadcast %66 : vector<1x50xf32> to vector<8x50xf32>
      %68 = arith.mulf %61, %67 : vector<8x50xf32>
      %cst_45 = arith.constant dense<0.000000e+00> : vector<8xf32>
      %69 = vector.multi_reduction <add>, %68, %cst_45 [1] : vector<8x50xf32> to vector<8xf32>
      %70 = vector.shape_cast %69 : vector<8xf32> to vector<8x1xf32>
      %c0_46 = arith.constant 0 : index
      %c0_47 = arith.constant 0 : index
      %71 = vector.load %arg6[%c0_46, %c0_47] : memref<1x1xf32, #tpu.memory_space<vmem>>, vector<1x1xf32>
      %72 = vector.broadcast %71 : vector<1x1xf32> to vector<8x1xf32>
      %73 = arith.addf %70, %72 : vector<8x1xf32>
      %c0_48 = arith.constant 0 : index
      %c0_49 = arith.constant 0 : index
      %74 = vector.load %arg7[%c0_48, %c0_49] : memref<8x1xf32, #tpu.memory_space<vmem>>, vector<8x1xf32>
      tpu.vector_store %arg7[%c0_48, %c0_49], %73 {strides = array<i32>} : memref<8x1xf32, #tpu.memory_space<vmem>>, vector<8x1xf32>,
    } else {
    }
    return
  }
  func.func @transform_0(%arg0: i32) -> (i32, i32, i32) {
    %c0_i32 = arith.constant 0 : i32
    %c0_i32_0 = arith.constant 0 : i32
    %c0_i32_1 = arith.constant 0 : i32
    return %arg0, %c0_i32, %c0_i32_0 : i32, i32, i32
  }
  func.func @transform_1(%arg0: i32) -> (i32, i32) {
    %c0_i32 = arith.constant 0 : i32
    %c0_i32_0 = arith.constant 0 : i32
    %c0_i32_1 = arith.constant 0 : i32
    return %c0_i32, %c0_i32_0 : i32, i32
  }
  func.func @transform_2(%arg0: i32) -> (i32, i32) {
    %c0_i32 = arith.constant 0 : i32
    %c0_i32_0 = arith.constant 0 : i32
    %c0_i32_1 = arith.constant 0 : i32
    return %c0_i32, %c0_i32_0 : i32, i32
  }
  func.func @transform_3(%arg0: i32) -> (i32, i32) {
    %c0_i32 = arith.constant 0 : i32
    %c0_i32_0 = arith.constant 0 : i32
    %c0_i32_1 = arith.constant 0 : i32
    return %c0_i32, %c0_i32_0 : i32, i32
  }
  func.func @transform_4(%arg0: i32) -> (i32, i32) {
    %c0_i32 = arith.constant 0 : i32
    %c0_i32_0 = arith.constant 0 : i32
    %c0_i32_1 = arith.constant 0 : i32
    return %c0_i32, %c0_i32_0 : i32, i32
  }
  func.func @transform_5(%arg0: i32) -> (i32, i32) {
    %c0_i32 = arith.constant 0 : i32
    %c0_i32_0 = arith.constant 0 : i32
    %c0_i32_1 = arith.constant 0 : i32
    return %c0_i32, %c0_i32_0 : i32, i32
  }
  func.func @transform_6(%arg0: i32) -> (i32, i32) {
    %c0_i32 = arith.constant 0 : i32
    %c0_i32_0 = arith.constant 0 : i32
    %c0_i32_1 = arith.constant 0 : i32
    return %c0_i32, %c0_i32_0 : i32, i32
  }
}

</mosaic_0001>

<llo_original>
// kernel: tpu_custom_call.1
$region0: #{tpu_custom_call.1}
  #allocation0 [shape = 'u32[]', space=smem, size = 0x4, offset = 0x4, fixed_abs, tag = 'smem constant byte address 0x4 - core index']
  #allocation1 [shape = 'u32[144,128]{1,0:T(1,128)}', space=vmem, size = 0x12000, scoped, tag = 'internal scratch']
  #allocation2 [shape = 'f32[8,50]{1,0:T(8,128)}', space=vmem, size = 0x1000, scoped, tag = 'scratch operand']
  #allocation3 [shape = 'f32[8,8,50]{2,1,0:T(8,128)}', space=vmem, size = 0x8000, scoped, tag = 'scratch operand']
  #allocation4 [shape = 'f32[1,1]{1,0:T(1,128)S(1)}', space=vmem, size = 0x200, scoped, tag = 'scoped memory for tpu_custom_call.1']
  %s0 = inlined_call_operand.hbm [shape: f32[8,8,16], index: 0, kind: input, shape index: {}]
  %s1 = inlined_call_operand.hbm [shape: f32[16,50], index: 1, kind: input, shape index: {}]
  %s2 = inlined_call_operand.hbm [shape: f32[50,50], index: 2, kind: input, shape index: {}]
  %s3 = inlined_call_operand.vmem [shape: f32[1,50], index: 3, kind: input, shape index: {}]
  %s4 = inlined_call_operand.vmem [shape: f32[1,50], index: 4, kind: input, shape index: {}]
  %s5 = inlined_call_operand.<no memory space> [shape: f32[1,1], index: 5, kind: input, shape index: {}]
  %s6 = inlined_call_operand.vmem [shape: f32[8,1], index: 6, kind: output, shape index: {}]
  %s7 = sld [smem:[#allocation0]]
  $region54: #{tpu_custom_call.1} parent=0
    _
  %s9 = ssub.s32 1, %s7
  %s10 = scalar_select 0, %s9, %s7
  %v11 = vstv %s5
  %12 = vst [vmem:[#allocation4] sm:$0x1] %v11
  $region1: #{tpu_custom_call.1} parent=0
    #allocation5 [shape = 'u8[32768]{0}', space=vmem, size = 0x8000, scoped, tag = 'input window, operand 0, single buffered']
    #allocation6 [shape = 's32[1]{0}', space=sflag, size = 0x4, scoped, tag = 'scoped memory for tpu_custom_call.1']
    #allocation7 [shape = 'u8[8192]{0}', space=vmem, size = 0x2000, scoped, tag = 'input window, operand 1, single buffered']
    #allocation8 [shape = 's32[1]{0}', space=sflag, size = 0x4, scoped, tag = 'scoped memory for tpu_custom_call.1']
    #allocation9 [shape = 'u8[28672]{0}', space=vmem, size = 0x7000, scoped, tag = 'input window, operand 2, single buffered']
    %13 = vsyncpa [#allocation6], 0
    %14 = vsyncpa [#allocation8], 0
    // Predicated region
    $region2: #{tpu_custom_call.1} parent=1 // pred_check
      _
    $region3: #{tpu_custom_call.1} parent=1 // pred_check_branch
      %16 = sbr.rel (0) target = $region5
    $region4: #{tpu_custom_call.1} parent=1 // pred_region
      %s18 = ssub.s32 1024, 1024
      %19 = vsyncadd [#allocation6], %s18
      %s20 = sshll.u32 [#allocation5], 4
      %s21 = int_to_ptr.vmem [resolvable:$true] %s20
      %26 = dma.hbm_to_vmem [thread:$0]  %s0, 1024, %s21, [#allocation6], 128, 128, 8
    $region5: #{tpu_custom_call.1} parent=1 // pred_fallthru
      _
    // Predicated region
    $region6: #{tpu_custom_call.1} parent=1 // pred_check
      _
    $region7: #{tpu_custom_call.1} parent=1 // pred_check_branch
      %28 = sbr.rel (0) target = $region9
    $region8: #{tpu_custom_call.1} parent=1 // pred_region
      %s30 = ssub.s32 256, 256
      %31 = vsyncadd [#allocation8], %s30
      %s32 = sshll.u32 [#allocation7], 4
      %s33 = int_to_ptr.vmem [resolvable:$true] %s32
      %38 = dma.hbm_to_vmem [thread:$0]  %s1, 256, %s33, [#allocation8], 128, 128, 8
    $region9: #{tpu_custom_call.1} parent=1 // pred_fallthru
      _
    // Predicated region
    $region10: #{tpu_custom_call.1} parent=1 // pred_check
      _
    $region11: #{tpu_custom_call.1} parent=1 // pred_check_branch
      %40 = sbr.rel (0) target = $region13
    $region12: #{tpu_custom_call.1} parent=1 // pred_region
      %s42 = ssub.s32 896, 896
      %43 = vsyncadd [#allocation8], %s42
      %s44 = sshll.u32 [#allocation9], 4
      %s45 = int_to_ptr.vmem [resolvable:$true] %s44
      %50 = dma.hbm_to_vmem [thread:$0]  %s2, 896, %s45, [#allocation8], 128, 128, 8
    $region13: #{tpu_custom_call.1} parent=1 // pred_fallthru
      _
    // Predicated region
    $region14: #{tpu_custom_call.1} parent=1 // pred_check
      _
    $region15: #{tpu_custom_call.1} parent=1 // pred_check_branch
      %52 = sbr.rel (0) target = $region17
    $region16: #{tpu_custom_call.1} parent=1 // pred_region
      _
    $region17: #{tpu_custom_call.1} parent=1 // pred_fallthru
      _
    // Predicated region
    $region18: #{tpu_custom_call.1} parent=1 // pred_check
      _
    $region19: #{tpu_custom_call.1} parent=1 // pred_check_branch
      %54 = sbr.rel (0) target = $region21
    $region20: #{tpu_custom_call.1} parent=1 // pred_region
      _
    $region21: #{tpu_custom_call.1} parent=1 // pred_fallthru
      _
    // Predicated region
    $region22: #{tpu_custom_call.1} parent=1 // pred_check
      _
    $region23: #{tpu_custom_call.1} parent=1 // pred_check_branch
      %56 = sbr.rel (0) target = $region25
    $region24: #{tpu_custom_call.1} parent=1 // pred_region
      _
    $region25: #{tpu_custom_call.1} parent=1 // pred_fallthru
      _
    // Predicated region
    $region26: #{tpu_custom_call.1} parent=1 // pred_check
      _
    $region27: #{tpu_custom_call.1} parent=1 // pred_check_branch
      %58 = sbr.rel (0) target = $region29
    $region28: #{tpu_custom_call.1} parent=1 // pred_region
      %59 = dma.done [#allocation6], 1024
    $region29: #{tpu_custom_call.1} parent=1 // pred_fallthru
      _
    // Predicated region
    $region30: #{tpu_custom_call.1} parent=1 // pred_check
      _
    $region31: #{tpu_custom_call.1} parent=1 // pred_check_branch
      %61 = sbr.rel (0) target = $region33
    $region32: #{tpu_custom_call.1} parent=1 // pred_region
      %62 = dma.done [#allocation8], 256
    $region33: #{tpu_custom_call.1} parent=1 // pred_fallthru
      _
    // Predicated region
    $region34: #{tpu_custom_call.1} parent=1 // pred_check
      _
    $region35: #{tpu_custom_call.1} parent=1 // pred_check_branch
      %64 = sbr.rel (0) target = $region37
    $region36: #{tpu_custom_call.1} parent=1 // pred_region
      %65 = dma.done [#allocation8], 896
    $region37: #{tpu_custom_call.1} parent=1 // pred_fallthru
      _
    %p66 = scmp.eq.s32.totalorder 0, 0
    // Predicated region
    $region38: #{tpu_custom_call.1} parent=1 // pred_check
      %p67 = pneg %p66
    $region39: #{tpu_custom_call.1} parent=1 // pred_check_branch
      %69 = sbr.rel (%p67) target = $region41
    $region40: #{tpu_custom_call.1} parent=1 // pred_region
      %vm70 = vcmask 408576
      %71 = vst.msk [vmem:[#allocation2] sm:$0xff] %vm70, 0.0
    $region41: #{tpu_custom_call.1} parent=1 // pred_fallthru
      _
    %v72 = vld [vmem:[#allocation5] sm:$0xff]
    %v73 = vld [vmem:[#allocation5 + $0x8] sm:$0xff]
    %v74 = vld [vmem:[#allocation5 + $0x10] sm:$0xff]
    %v75 = vld [vmem:[#allocation5 + $0x18] sm:$0xff]
    %v76 = vld [vmem:[#allocation5 + $0x20] sm:$0xff]
    %v77 = vld [vmem:[#allocation5 + $0x28] sm:$0xff]
    %v78 = vld [vmem:[#allocation5 + $0x30] sm:$0xff]
    %v79 = vld [vmem:[#allocation5 + $0x38] sm:$0xff]
    %v80 = vld [vmem:[#allocation7] sm:$0xff]
    %v81 = vld [vmem:[#allocation7 + $0x8] sm:$0xff]
    %v82 = vld [vmem:[%s3] sm:$0x1]
    %v84 = vlaneseq
    %v85 = vshrl.u32 %v84, 7
    %v86 = vsub.s32 0, %v85
    %v87 = vrot.slane %v82, %v86
    %vm89 = vcmask 130048
    %v91 = vsel %vm89, %v72, 0
    %v94 = vsel %vm89, %v73, 0
    %v97 = vsel %vm89, %v74, 0
    %v100 = vsel %vm89, %v75, 0
    %v103 = vsel %vm89, %v76, 0
    %v106 = vsel %vm89, %v77, 0
    %v109 = vsel %vm89, %v78, 0
    %v112 = vsel %vm89, %v79, 0
    %114 = vmatprep.subr.mxu0 0.0
    %115 = vmatpush1.msra.mxu0 %v80
    %116 = vmatprep.subr.mxu0 0.0
    %117 = vmatpush1.msra.mxu0 %v81
    %118 = vmatprep.subr.mxu0 0.0
    %119 = vmatpush1.msra.mxu0 0.0
    %120 = vmatprep.subr.mxu0 0.0
    %121 = vmatpush1.msra.mxu0 0.0
    %122 = vmatprep.subr.mxu0 0.0
    %123 = vmatpush1.msra.mxu0 0.0
    %124 = vmatprep.subr.mxu0 0.0
    %125 = vmatpush1.msra.mxu0 0.0
    %126 = vmatprep.subr.mxu0 0.0
    %127 = vmatpush1.msra.mxu0 0.0
    %128 = vmatprep.subr.mxu0 0.0
    %129 = vmatpush1.msra.mxu0 0.0
    %130 = vmatprep.subr.mxu0 0.0
    %131 = vmatpush1.msra.mxu0 0.0
    %132 = vmatprep.subr.mxu0 0.0
    %133 = vmatpush1.msra.mxu0 0.0
    %134 = vmatprep.subr.mxu0 0.0
    %135 = vmatpush1.msra.mxu0 0.0
    %136 = vmatprep.subr.mxu0 0.0
    %137 = vmatpush1.msra.mxu0 0.0
    %138 = vmatprep.subr.mxu0 0.0
    %139 = vmatpush1.msra.mxu0 0.0
    %140 = vmatprep.subr.mxu0 0.0
    %141 = vmatpush1.msra.mxu0 0.0
    %142 = vmatprep.subr.mxu0 0.0
    %143 = vmatpush1.msra.mxu0 0.0
    %144 = vmatprep.subr.mxu0 0.0
    %145 = vmatpush1.msra.mxu0 0.0
    %146 = vmatprep.subr.mxu0 0.0
    %147 = vmatpush1.msra.mxu0 0.0
    %148 = vmatprep.subr.mxu0 0.0
    %149 = vmatpush1.msra.mxu0 0.0
    %150 = vmatprep.subr.mxu0 0.0
    %151 = vmatpush1.msra.mxu0 0.0
    %152 = vmatprep.subr.mxu0 0.0
    %153 = vmatpush1.msra.mxu0 0.0
    %154 = vmatprep.subr.mxu0 0.0
    %155 = vmatpush1.msra.mxu0 0.0
    %156 = vmatprep.subr.mxu0 0.0
    %157 = vmatpush1.msra.mxu0 0.0
    %158 = vmatprep.subr.mxu0 0.0
    %159 = vmatpush1.msra.mxu0 0.0
    %160 = vmatprep.subr.mxu0 0.0
    %161 = vmatpush1.msra.mxu0 0.0
    %162 = vmatprep.subr.mxu0 0.0
    %163 = vmatpush1.msra.mxu0 0.0
    %164 = vmatprep.subr.mxu0 0.0
    %165 = vmatpush1.msra.mxu0 0.0
    %166 = vmatprep.subr.mxu0 0.0
    %167 = vmatpush1.msra.mxu0 0.0
    %168 = vmatprep.subr.mxu0 0.0
    %169 = vmatpush1.msra.mxu0 0.0
    %170 = vmatprep.subr.mxu0 0.0
    %171 = vmatpush1.msra.mxu0 0.0
    %172 = vmatprep.subr.mxu0 0.0
    %173 = vmatpush1.msra.mxu0 0.0
    %174 = vmatprep.subr.mxu0 0.0
    %175 = vmatpush1.msra.mxu0 0.0
    %176 = vmatprep.subr.mxu0 0.0
    %177 = vmatpush1.msra.mxu0 0.0
    %178 = vmatprep.mubr.f32.mxu0 0.0
    %179 = vmatmul.mubr.f32.gmra.mrb[0].mxu0 %v91
    %v180 = vpop.f32.mrb[0].mxu0
    %v181 = vadd.f32 %v87, %v180
    %v182 = vpop.f32.mrb[0].mxu0
    %183 = vmatprep.mubr.f32.mxu0 0.0
    %184 = vmatmul.mubr.f32.gmra.mrb[0].mxu0 %v94
    %v185 = vpop.f32.mrb[0].mxu0
    %v186 = vadd.f32 %v87, %v185
    %v187 = vpop.f32.mrb[0].mxu0
    %188 = vmatprep.mubr.f32.mxu0 0.0
    %189 = vmatmul.mubr.f32.gmra.mrb[0].mxu0 %v97
    %v190 = vpop.f32.mrb[0].mxu0
    %v191 = vadd.f32 %v87, %v190
    %v192 = vpop.f32.mrb[0].mxu0
    %193 = vmatprep.mubr.f32.mxu0 0.0
    %194 = vmatmul.mubr.f32.gmra.mrb[0].mxu0 %v100
    %v195 = vpop.f32.mrb[0].mxu0
    %v196 = vadd.f32 %v87, %v195
    %v197 = vpop.f32.mrb[0].mxu0
    %198 = vmatprep.mubr.f32.mxu0 0.0
    %199 = vmatmul.mubr.f32.gmra.mrb[0].mxu0 %v103
    %v200 = vpop.f32.mrb[0].mxu0
    %v201 = vadd.f32 %v87, %v200
    %v202 = vpop.f32.mrb[0].mxu0
    %203 = vmatprep.mubr.f32.mxu0 0.0
    %204 = vmatmul.mubr.f32.gmra.mrb[0].mxu0 %v106
    %v205 = vpop.f32.mrb[0].mxu0
    %v206 = vadd.f32 %v87, %v205
    %v207 = vpop.f32.mrb[0].mxu0
    %208 = vmatprep.mubr.f32.mxu0 0.0
    %209 = vmatmul.mubr.f32.gmra.mrb[0].mxu0 %v109
    %v210 = vpop.f32.mrb[0].mxu0
    %v211 = vadd.f32 %v87, %v210
    %v212 = vpop.f32.mrb[0].mxu0
    %213 = vmatprep.mubr.f32.mxu0 0.0
    %214 = vmatmul.mubr.f32.gmra.mrb[0].mxu0 %v112
    %v215 = vpop.f32.mrb[0].mxu0
    %v216 = vadd.f32 %v87, %v215
    %v217 = vpop.f32.mrb[0].mxu0
    %218 = vdwg.mxu0
    %vm219 = vcmask 408576
    %220 = vst.msk [vmem:[#allocation3] sm:$0xff] %vm219, %v181
    %221 = vst.msk [vmem:[#allocation3 + $0x8] sm:$0xff] %vm219, %v186
    %222 = vst.msk [vmem:[#allocation3 + $0x10] sm:$0xff] %vm219, %v191
    %223 = vst.msk [vmem:[#allocation3 + $0x18] sm:$0xff] %vm219, %v196
    %224 = vst.msk [vmem:[#allocation3 + $0x20] sm:$0xff] %vm219, %v201
    %225 = vst.msk [vmem:[#allocation3 + $0x28] sm:$0xff] %vm219, %v206
    %226 = vst.msk [vmem:[#allocation3 + $0x30] sm:$0xff] %vm219, %v211
    %227 = vst.msk [vmem:[#allocation3 + $0x38] sm:$0xff] %vm219, %v216
    %v228 = vld [vmem:[#allocation9] sm:$0xff]
    %v229 = vld [vmem:[#allocation9 + $0x8] sm:$0xff]
    %v230 = vld [vmem:[#allocation9 + $0x10] sm:$0xff]
    %v231 = vld [vmem:[#allocation9 + $0x18] sm:$0xff]
    %v232 = vld [vmem:[#allocation9 + $0x20] sm:$0xff]
    %v233 = vld [vmem:[#allocation9 + $0x28] sm:$0xff]
    %v234 = vld [vmem:[#allocation9 + $0x30] sm:$0x3]
    %v235 = vld [vmem:[#allocation2] sm:$0xff]
    %v236 = vld [vmem:[#allocation3] sm:$0xff]
    %v238 = vsel %vm219, %v235, 0
    %vm240 = vcmask 1041408
    %v242 = vsel %vm240, %v234, 0
    %244 = vmatprep.subr.mxu0 0.0
    %245 = vmatpush1.msra.mxu0 %v228
    %246 = vmatprep.subr.mxu0 0.0
    %247 = vmatpush1.msra.mxu0 %v229
    %248 = vmatprep.subr.mxu0 0.0
    %249 = vmatpush1.msra.mxu0 %v230
    %250 = vmatprep.subr.mxu0 0.0
    %251 = vmatpush1.msra.mxu0 %v231
    %252 = vmatprep.subr.mxu0 0.0
    %253 = vmatpush1.msra.mxu0 %v232
    %254 = vmatprep.subr.mxu0 0.0
    %255 = vmatpush1.msra.mxu0 %v233
    %256 = vmatprep.subr.mxu0 0.0
    %257 = vmatpush1.msra.mxu0 %v242
    %258 = vmatprep.subr.mxu0 0.0
    %259 = vmatpush1.msra.mxu0 0.0
    %260 = vmatprep.subr.mxu0 0.0
    %261 = vmatpush1.msra.mxu0 0.0
    %262 = vmatprep.subr.mxu0 0.0
    %263 = vmatpush1.msra.mxu0 0.0
    %264 = vmatprep.subr.mxu0 0.0
    %265 = vmatpush1.msra.mxu0 0.0
    %266 = vmatprep.subr.mxu0 0.0
    %267 = vmatpush1.msra.mxu0 0.0
    %268 = vmatprep.subr.mxu0 0.0
    %269 = vmatpush1.msra.mxu0 0.0
    %270 = vmatprep.subr.mxu0 0.0
    %271 = vmatpush1.msra.mxu0 0.0
    %272 = vmatprep.subr.mxu0 0.0
    %273 = vmatpush1.msra.mxu0 0.0
    %274 = vmatprep.subr.mxu0 0.0
    %275 = vmatpush1.msra.mxu0 0.0
    %276 = vmatprep.subr.mxu0 0.0
    %277 = vmatpush1.msra.mxu0 0.0
    %278 = vmatprep.subr.mxu0 0.0
    %279 = vmatpush1.msra.mxu0 0.0
    %280 = vmatprep.subr.mxu0 0.0
    %281 = vmatpush1.msra.mxu0 0.0
    %282 = vmatprep.subr.mxu0 0.0
    %283 = vmatpush1.msra.mxu0 0.0
    %284 = vmatprep.subr.mxu0 0.0
    %285 = vmatpush1.msra.mxu0 0.0
    %286 = vmatprep.subr.mxu0 0.0
    %287 = vmatpush1.msra.mxu0 0.0
    %288 = vmatprep.subr.mxu0 0.0
    %289 = vmatpush1.msra.mxu0 0.0
    %290 = vmatprep.subr.mxu0 0.0
    %291 = vmatpush1.msra.mxu0 0.0
    %292 = vmatprep.subr.mxu0 0.0
    %293 = vmatpush1.msra.mxu0 0.0
    %294 = vmatprep.subr.mxu0 0.0
    %295 = vmatpush1.msra.mxu0 0.0
    %296 = vmatprep.subr.mxu0 0.0
    %297 = vmatpush1.msra.mxu0 0.0
    %298 = vmatprep.subr.mxu0 0.0
    %299 = vmatpush1.msra.mxu0 0.0
    %300 = vmatprep.subr.mxu0 0.0
    %301 = vmatpush1.msra.mxu0 0.0
    %302 = vmatprep.subr.mxu0 0.0
    %303 = vmatpush1.msra.mxu0 0.0
    %304 = vmatprep.subr.mxu0 0.0
    %305 = vmatpush1.msra.mxu0 0.0
    %306 = vmatprep.subr.mxu0 0.0
    %307 = vmatpush1.msra.mxu0 0.0
    %308 = vmatprep.mubr.f32.mxu0 0.0
    %309 = vmatmul.mubr.f32.gmra.mrb[0].mxu0 %v238
    %v310 = vpop.f32.mrb[0].mxu0
    %v311 = vadd.f32 0.0, %v310
    %v312 = vpop.f32.mrb[0].mxu0
    %313 = vdwg.mxu0
    %v314 = vadd.f32 %v236, %v311
    %v315 = vtanh.pop %v314
    %s316 = scalar_lea.vmem [#allocation3], 8
    %v317 = vld [vmem:[%s316] sm:$0xff]
    %v319 = vsel %vm219, %v315, 0
    %321 = vmatprep.subr.mxu0 0.0
    %322 = vmatpush1.msra.mxu0 %v228
    %323 = vmatprep.subr.mxu0 0.0
    %324 = vmatpush1.msra.mxu0 %v229
    %325 = vmatprep.subr.mxu0 0.0
    %326 = vmatpush1.msra.mxu0 %v230
    %327 = vmatprep.subr.mxu0 0.0
    %328 = vmatpush1.msra.mxu0 %v231
    %329 = vmatprep.subr.mxu0 0.0
    %330 = vmatpush1.msra.mxu0 %v232
    %331 = vmatprep.subr.mxu0 0.0
    %332 = vmatpush1.msra.mxu0 %v233
    %333 = vmatprep.subr.mxu0 0.0
    %334 = vmatpush1.msra.mxu0 %v242
    %335 = vmatprep.subr.mxu0 0.0
    %336 = vmatpush1.msra.mxu0 0.0
    %337 = vmatprep.subr.mxu0 0.0
    %338 = vmatpush1.msra.mxu0 0.0
    %339 = vmatprep.subr.mxu0 0.0
    %340 = vmatpush1.msra.mxu0 0.0
    %341 = vmatprep.subr.mxu0 0.0
    %342 = vmatpush1.msra.mxu0 0.0
    %343 = vmatprep.subr.mxu0 0.0
    %344 = vmatpush1.msra.mxu0 0.0
    %345 = vmatprep.subr.mxu0 0.0
    %346 = vmatpush1.msra.mxu0 0.0
    %347 = vmatprep.subr.mxu0 0.0
    %348 = vmatpush1.msra.mxu0 0.0
    %349 = vmatprep.subr.mxu0 0.0
    %350 = vmatpush1.msra.mxu0 0.0
    %351 = vmatprep.subr.mxu0 0.0
    %352 = vmatpush1.msra.mxu0 0.0
    %353 = vmatprep.subr.mxu0 0.0
    %354 = vmatpush1.msra.mxu0 0.0
    %355 = vmatprep.subr.mxu0 0.0
    %356 = vmatpush1.msra.mxu0 0.0
    %357 = vmatprep.subr.mxu0 0.0
    %358 = vmatpush1.msra.mxu0 0.0
    %359 = vmatprep.subr.mxu0 0.0
    %360 = vmatpush1.msra.mxu0 0.0
    %361 = vmatprep.subr.mxu0 0.0
    %362 = vmatpush1.msra.mxu0 0.0
    %363 = vmatprep.subr.mxu0 0.0
    %364 = vmatpush1.msra.mxu0 0.0
    %365 = vmatprep.subr.mxu0 0.0
    %366 = vmatpush1.msra.mxu0 0.0
    %367 = vmatprep.subr.mxu0 0.0
    %368 = vmatpush1.msra.mxu0 0.0
    %369 = vmatprep.subr.mxu0 0.0
    %370 = vmatpush1.msra.mxu0 0.0
    %371 = vmatprep.subr.mxu0 0.0
    %372 = vmatpush1.msra.mxu0 0.0
    %373 = vmatprep.subr.mxu0 0.0
    %374 = vmatpush1.msra.mxu0 0.0
    %375 = vmatprep.subr.mxu0 0.0
    %376 = vmatpush1.msra.mxu0 0.0
    %377 = vmatprep.subr.mxu0 0.0
    %378 = vmatpush1.msra.mxu0 0.0
    %379 = vmatprep.subr.mxu0 0.0
    %380 = vmatpush1.msra.mxu0 0.0
    %381 = vmatprep.subr.mxu0 0.0
    %382 = vmatpush1.msra.mxu0 0.0
    %383 = vmatprep.subr.mxu0 0.0
    %384 = vmatpush1.msra.mxu0 0.0
    %385 = vmatprep.mubr.f32.mxu0 0.0
    %386 = vmatmul.mubr.f32.gmra.mrb[0].mxu0 %v319
    %v387 = vpop.f32.mrb[0].mxu0
    %v388 = vadd.f32 0.0, %v387
    %v389 = vpop.f32.mrb[0].mxu0
    %390 = vdwg.mxu0
    %v391 = vadd.f32 %v317, %v388
    %v392 = vtanh.pop %v391
    %s393 = scalar_lea.vmem [#allocation3], 16
    %v394 = vld [vmem:[%s393] sm:$0xff]
    %v396 = vsel %vm219, %v392, 0
    %398 = vmatprep.subr.mxu0 0.0
    %399 = vmatpush1.msra.mxu0 %v228
    %400 = vmatprep.subr.mxu0 0.0
    %401 = vmatpush1.msra.mxu0 %v229
    %402 = vmatprep.subr.mxu0 0.0
    %403 = vmatpush1.msra.mxu0 %v230
    %404 = vmatprep.subr.mxu0 0.0
    %405 = vmatpush1.msra.mxu0 %v231
    %406 = vmatprep.subr.mxu0 0.0
    %407 = vmatpush1.msra.mxu0 %v232
    %408 = vmatprep.subr.mxu0 0.0
    %409 = vmatpush1.msra.mxu0 %v233
    %410 = vmatprep.subr.mxu0 0.0
    %411 = vmatpush1.msra.mxu0 %v242
    %412 = vmatprep.subr.mxu0 0.0
    %413 = vmatpush1.msra.mxu0 0.0
    %414 = vmatprep.subr.mxu0 0.0
    %415 = vmatpush1.msra.mxu0 0.0
    %416 = vmatprep.subr.mxu0 0.0
    %417 = vmatpush1.msra.mxu0 0.0
    %418 = vmatprep.subr.mxu0 0.0
    %419 = vmatpush1.msra.mxu0 0.0
    %420 = vmatprep.subr.mxu0 0.0
    %421 = vmatpush1.msra.mxu0 0.0
    %422 = vmatprep.subr.mxu0 0.0
    %423 = vmatpush1.msra.mxu0 0.0
    %424 = vmatprep.subr.mxu0 0.0
    %425 = vmatpush1.msra.mxu0 0.0
    %426 = vmatprep.subr.mxu0 0.0
    %427 = vmatpush1.msra.mxu0 0.0
    %428 = vmatprep.subr.mxu0 0.0
    %429 = vmatpush1.msra.mxu0 0.0
    %430 = vmatprep.subr.mxu0 0.0
    %431 = vmatpush1.msra.mxu0 0.0
    %432 = vmatprep.subr.mxu0 0.0
    %433 = vmatpush1.msra.mxu0 0.0
    %434 = vmatprep.subr.mxu0 0.0
    %435 = vmatpush1.msra.mxu0 0.0
    %436 = vmatprep.subr.mxu0 0.0
    %437 = vmatpush1.msra.mxu0 0.0
    %438 = vmatprep.subr.mxu0 0.0
    %439 = vmatpush1.msra.mxu0 0.0
    %440 = vmatprep.subr.mxu0 0.0
    %441 = vmatpush1.msra.mxu0 0.0
    %442 = vmatprep.subr.mxu0 0.0
    %443 = vmatpush1.msra.mxu0 0.0
    %444 = vmatprep.subr.mxu0 0.0
    %445 = vmatpush1.msra.mxu0 0.0
    %446 = vmatprep.subr.mxu0 0.0
    %447 = vmatpush1.msra.mxu0 0.0
    %448 = vmatprep.subr.mxu0 0.0
    %449 = vmatpush1.msra.mxu0 0.0
    %450 = vmatprep.subr.mxu0 0.0
    %451 = vmatpush1.msra.mxu0 0.0
    %452 = vmatprep.subr.mxu0 0.0
    %453 = vmatpush1.msra.mxu0 0.0
    %454 = vmatprep.subr.mxu0 0.0
    %455 = vmatpush1.msra.mxu0 0.0
    %456 = vmatprep.subr.mxu0 0.0
    %457 = vmatpush1.msra.mxu0 0.0
    %458 = vmatprep.subr.mxu0 0.0
    %459 = vmatpush1.msra.mxu0 0.0
    %460 = vmatprep.subr.mxu0 0.0
    %461 = vmatpush1.msra.mxu0 0.0
    %462 = vmatprep.mubr.f32.mxu0 0.0
    %463 = vmatmul.mubr.f32.gmra.mrb[0].mxu0 %v396
    %v464 = vpop.f32.mrb[0].mxu0
    %v465 = vadd.f32 0.0, %v464
    %v466 = vpop.f32.mrb[0].mxu0
    %467 = vdwg.mxu0
    %v468 = vadd.f32 %v394, %v465
    %v469 = vtanh.pop %v468
    %s470 = scalar_lea.vmem [#allocation3], 24
    %v471 = vld [vmem:[%s470] sm:$0xff]
    %v473 = vsel %vm219, %v469, 0
    %475 = vmatprep.subr.mxu0 0.0
    %476 = vmatpush1.msra.mxu0 %v228
    %477 = vmatprep.subr.mxu0 0.0
    %478 = vmatpush1.msra.mxu0 %v229
    %479 = vmatprep.subr.mxu0 0.0
    %480 = vmatpush1.msra.mxu0 %v230
    %481 = vmatprep.subr.mxu0 0.0
    %482 = vmatpush1.msra.mxu0 %v231
    %483 = vmatprep.subr.mxu0 0.0
    %484 = vmatpush1.msra.mxu0 %v232
    %485 = vmatprep.subr.mxu0 0.0
    %486 = vmatpush1.msra.mxu0 %v233
    %487 = vmatprep.subr.mxu0 0.0
    %488 = vmatpush1.msra.mxu0 %v242
    %489 = vmatprep.subr.mxu0 0.0
    %490 = vmatpush1.msra.mxu0 0.0
    %491 = vmatprep.subr.mxu0 0.0
    %492 = vmatpush1.msra.mxu0 0.0
    %493 = vmatprep.subr.mxu0 0.0
    %494 = vmatpush1.msra.mxu0 0.0
    %495 = vmatprep.subr.mxu0 0.0
    %496 = vmatpush1.msra.mxu0 0.0
    %497 = vmatprep.subr.mxu0 0.0
    %498 = vmatpush1.msra.mxu0 0.0
    %499 = vmatprep.subr.mxu0 0.0
    %500 = vmatpush1.msra.mxu0 0.0
    %501 = vmatprep.subr.mxu0 0.0
    %502 = vmatpush1.msra.mxu0 0.0
    %503 = vmatprep.subr.mxu0 0.0
    %504 = vmatpush1.msra.mxu0 0.0
    %505 = vmatprep.subr.mxu0 0.0
    %506 = vmatpush1.msra.mxu0 0.0
    %507 = vmatprep.subr.mxu0 0.0
    %508 = vmatpush1.msra.mxu0 0.0
    %509 = vmatprep.subr.mxu0 0.0
    %510 = vmatpush1.msra.mxu0 0.0
    %511 = vmatprep.subr.mxu0 0.0
    %512 = vmatpush1.msra.mxu0 0.0
    %513 = vmatprep.subr.mxu0 0.0
    %514 = vmatpush1.msra.mxu0 0.0
    %515 = vmatprep.subr.mxu0 0.0
    %516 = vmatpush1.msra.mxu0 0.0
    %517 = vmatprep.subr.mxu0 0.0
    %518 = vmatpush1.msra.mxu0 0.0
    %519 = vmatprep.subr.mxu0 0.0
    %520 = vmatpush1.msra.mxu0 0.0
    %521 = vmatprep.subr.mxu0 0.0
    %522 = vmatpush1.msra.mxu0 0.0
    %523 = vmatprep.subr.mxu0 0.0
    %524 = vmatpush1.msra.mxu0 0.0
    %525 = vmatprep.subr.mxu0 0.0
    %526 = vmatpush1.msra.mxu0 0.0
    %527 = vmatprep.subr.mxu0 0.0
    %528 = vmatpush1.msra.mxu0 0.0
    %529 = vmatprep.subr.mxu0 0.0
    %530 = vmatpush1.msra.mxu0 0.0
    %531 = vmatprep.subr.mxu0 0.0
    %532 = vmatpush1.msra.mxu0 0.0
    %533 = vmatprep.subr.mxu0 0.0
    %534 = vmatpush1.msra.mxu0 0.0
    %535 = vmatprep.subr.mxu0 0.0
    %536 = vmatpush1.msra.mxu0 0.0
    %537 = vmatprep.subr.mxu0 0.0
    %538 = vmatpush1.msra.mxu0 0.0
    %539 = vmatprep.mubr.f32.mxu0 0.0
    %540 = vmatmul.mubr.f32.gmra.mrb[0].mxu0 %v473
    %v541 = vpop.f32.mrb[0].mxu0
    %v542 = vadd.f32 0.0, %v541
    %v543 = vpop.f32.mrb[0].mxu0
    %544 = vdwg.mxu0
    %v545 = vadd.f32 %v471, %v542
    %v546 = vtanh.pop %v545
    %s547 = scalar_lea.vmem [#allocation3], 32
    %v548 = vld [vmem:[%s547] sm:$0xff]
    %v550 = vsel %vm219, %v546, 0
    %552 = vmatprep.subr.mxu0 0.0
    %553 = vmatpush1.msra.mxu0 %v228
    %554 = vmatprep.subr.mxu0 0.0
    %555 = vmatpush1.msra.mxu0 %v229
    %556 = vmatprep.subr.mxu0 0.0
    %557 = vmatpush1.msra.mxu0 %v230
    %558 = vmatprep.subr.mxu0 0.0
    %559 = vmatpush1.msra.mxu0 %v231
    %560 = vmatprep.subr.mxu0 0.0
    %561 = vmatpush1.msra.mxu0 %v232
    %562 = vmatprep.subr.mxu0 0.0
    %563 = vmatpush1.msra.mxu0 %v233
    %564 = vmatprep.subr.mxu0 0.0
    %565 = vmatpush1.msra.mxu0 %v242
    %566 = vmatprep.subr.mxu0 0.0
    %567 = vmatpush1.msra.mxu0 0.0
    %568 = vmatprep.subr.mxu0 0.0
    %569 = vmatpush1.msra.mxu0 0.0
    %570 = vmatprep.subr.mxu0 0.0
    %571 = vmatpush1.msra.mxu0 0.0
    %572 = vmatprep.subr.mxu0 0.0
    %573 = vmatpush1.msra.mxu0 0.0
    %574 = vmatprep.subr.mxu0 0.0
    %575 = vmatpush1.msra.mxu0 0.0
    %576 = vmatprep.subr.mxu0 0.0
    %577 = vmatpush1.msra.mxu0 0.0
    %578 = vmatprep.subr.mxu0 0.0
    %579 = vmatpush1.msra.mxu0 0.0
    %580 = vmatprep.subr.mxu0 0.0
    %581 = vmatpush1.msra.mxu0 0.0
    %582 = vmatprep.subr.mxu0 0.0
    %583 = vmatpush1.msra.mxu0 0.0
    %584 = vmatprep.subr.mxu0 0.0
    %585 = vmatpush1.msra.mxu0 0.0
    %586 = vmatprep.subr.mxu0 0.0
    %587 = vmatpush1.msra.mxu0 0.0
    %588 = vmatprep.subr.mxu0 0.0
    %589 = vmatpush1.msra.mxu0 0.0
    %590 = vmatprep.subr.mxu0 0.0
    %591 = vmatpush1.msra.mxu0 0.0
    %592 = vmatprep.subr.mxu0 0.0
    %593 = vmatpush1.msra.mxu0 0.0
    %594 = vmatprep.subr.mxu0 0.0
    %595 = vmatpush1.msra.mxu0 0.0
    %596 = vmatprep.subr.mxu0 0.0
    %597 = vmatpush1.msra.mxu0 0.0
    %598 = vmatprep.subr.mxu0 0.0
    %599 = vmatpush1.msra.mxu0 0.0
    %600 = vmatprep.subr.mxu0 0.0
    %601 = vmatpush1.msra.mxu0 0.0
    %602 = vmatprep.subr.mxu0 0.0
    %603 = vmatpush1.msra.mxu0 0.0
    %604 = vmatprep.subr.mxu0 0.0
    %605 = vmatpush1.msra.mxu0 0.0
    %606 = vmatprep.subr.mxu0 0.0
    %607 = vmatpush1.msra.mxu0 0.0
    %608 = vmatprep.subr.mxu0 0.0
    %609 = vmatpush1.msra.mxu0 0.0
    %610 = vmatprep.subr.mxu0 0.0
    %611 = vmatpush1.msra.mxu0 0.0
    %612 = vmatprep.subr.mxu0 0.0
    %613 = vmatpush1.msra.mxu0 0.0
    %614 = vmatprep.subr.mxu0 0.0
    %615 = vmatpush1.msra.mxu0 0.0
    %616 = vmatprep.mubr.f32.mxu0 0.0
    %617 = vmatmul.mubr.f32.gmra.mrb[0].mxu0 %v550
    %v618 = vpop.f32.mrb[0].mxu0
    %v619 = vadd.f32 0.0, %v618
    %v620 = vpop.f32.mrb[0].mxu0
    %621 = vdwg.mxu0
    %v622 = vadd.f32 %v548, %v619
    %v623 = vtanh.pop %v622
    %s624 = scalar_lea.vmem [#allocation3], 40
    %v625 = vld [vmem:[%s624] sm:$0xff]
    %v627 = vsel %vm219, %v623, 0
    %629 = vmatprep.subr.mxu0 0.0
    %630 = vmatpush1.msra.mxu0 %v228
    %631 = vmatprep.subr.mxu0 0.0
    %632 = vmatpush1.msra.mxu0 %v229
    %633 = vmatprep.subr.mxu0 0.0
    %634 = vmatpush1.msra.mxu0 %v230
    %635 = vmatprep.subr.mxu0 0.0
    %636 = vmatpush1.msra.mxu0 %v231
    %637 = vmatprep.subr.mxu0 0.0
    %638 = vmatpush1.msra.mxu0 %v232
    %639 = vmatprep.subr.mxu0 0.0
    %640 = vmatpush1.msra.mxu0 %v233
    %641 = vmatprep.subr.mxu0 0.0
    %642 = vmatpush1.msra.mxu0 %v242
    %643 = vmatprep.subr.mxu0 0.0
    %644 = vmatpush1.msra.mxu0 0.0
    %645 = vmatprep.subr.mxu0 0.0
    %646 = vmatpush1.msra.mxu0 0.0
    %647 = vmatprep.subr.mxu0 0.0
    %648 = vmatpush1.msra.mxu0 0.0
    %649 = vmatprep.subr.mxu0 0.0
    %650 = vmatpush1.msra.mxu0 0.0
    %651 = vmatprep.subr.mxu0 0.0
    %652 = vmatpush1.msra.mxu0 0.0
    %653 = vmatprep.subr.mxu0 0.0
    %654 = vmatpush1.msra.mxu0 0.0
    %655 = vmatprep.subr.mxu0 0.0
    %656 = vmatpush1.msra.mxu0 0.0
    %657 = vmatprep.subr.mxu0 0.0
    %658 = vmatpush1.msra.mxu0 0.0
    %659 = vmatprep.subr.mxu0 0.0
    %660 = vmatpush1.msra.mxu0 0.0
    %661 = vmatprep.subr.mxu0 0.0
    %662 = vmatpush1.msra.mxu0 0.0
    %663 = vmatprep.subr.mxu0 0.0
    %664 = vmatpush1.msra.mxu0 0.0
    %665 = vmatprep.subr.mxu0 0.0
    %666 = vmatpush1.msra.mxu0 0.0
    %667 = vmatprep.subr.mxu0 0.0
    %668 = vmatpush1.msra.mxu0 0.0
    %669 = vmatprep.subr.mxu0 0.0
    %670 = vmatpush1.msra.mxu0 0.0
    %671 = vmatprep.subr.mxu0 0.0
    %672 = vmatpush1.msra.mxu0 0.0
    %673 = vmatprep.subr.mxu0 0.0
    %674 = vmatpush1.msra.mxu0 0.0
    %675 = vmatprep.subr.mxu0 0.0
    %676 = vmatpush1.msra.mxu0 0.0
    %677 = vmatprep.subr.mxu0 0.0
    %678 = vmatpush1.msra.mxu0 0.0
    %679 = vmatprep.subr.mxu0 0.0
    %680 = vmatpush1.msra.mxu0 0.0
    %681 = vmatprep.subr.mxu0 0.0
    %682 = vmatpush1.msra.mxu0 0.0
    %683 = vmatprep.subr.mxu0 0.0
    %684 = vmatpush1.msra.mxu0 0.0
    %685 = vmatprep.subr.mxu0 0.0
    %686 = vmatpush1.msra.mxu0 0.0
    %687 = vmatprep.subr.mxu0 0.0
    %688 = vmatpush1.msra.mxu0 0.0
    %689 = vmatprep.subr.mxu0 0.0
    %690 = vmatpush1.msra.mxu0 0.0
    %691 = vmatprep.subr.mxu0 0.0
    %692 = vmatpush1.msra.mxu0 0.0
    %693 = vmatprep.mubr.f32.mxu0 0.0
    %694 = vmatmul.mubr.f32.gmra.mrb[0].mxu0 %v627
    %v695 = vpop.f32.mrb[0].mxu0
    %v696 = vadd.f32 0.0, %v695
    %v697 = vpop.f32.mrb[0].mxu0
    %698 = vdwg.mxu0
    %v699 = vadd.f32 %v625, %v696
    %v700 = vtanh.pop %v699
    %s701 = scalar_lea.vmem [#allocation3], 48
    %v702 = vld [vmem:[%s701] sm:$0xff]
    %v704 = vsel %vm219, %v700, 0
    %706 = vmatprep.subr.mxu0 0.0
    %707 = vmatpush1.msra.mxu0 %v228
    %708 = vmatprep.subr.mxu0 0.0
    %709 = vmatpush1.msra.mxu0 %v229
    %710 = vmatprep.subr.mxu0 0.0
    %711 = vmatpush1.msra.mxu0 %v230
    %712 = vmatprep.subr.mxu0 0.0
    %713 = vmatpush1.msra.mxu0 %v231
    %714 = vmatprep.subr.mxu0 0.0
    %715 = vmatpush1.msra.mxu0 %v232
    %716 = vmatprep.subr.mxu0 0.0
    %717 = vmatpush1.msra.mxu0 %v233
    %718 = vmatprep.subr.mxu0 0.0
    %719 = vmatpush1.msra.mxu0 %v242
    %720 = vmatprep.subr.mxu0 0.0
    %721 = vmatpush1.msra.mxu0 0.0
    %722 = vmatprep.subr.mxu0 0.0
    %723 = vmatpush1.msra.mxu0 0.0
    %724 = vmatprep.subr.mxu0 0.0
    %725 = vmatpush1.msra.mxu0 0.0
    %726 = vmatprep.subr.mxu0 0.0
    %727 = vmatpush1.msra.mxu0 0.0
    %728 = vmatprep.subr.mxu0 0.0
    %729 = vmatpush1.msra.mxu0 0.0
    %730 = vmatprep.subr.mxu0 0.0
    %731 = vmatpush1.msra.mxu0 0.0
    %732 = vmatprep.subr.mxu0 0.0
    %733 = vmatpush1.msra.mxu0 0.0
    %734 = vmatprep.subr.mxu0 0.0
    %735 = vmatpush1.msra.mxu0 0.0
    %736 = vmatprep.subr.mxu0 0.0
    %737 = vmatpush1.msra.mxu0 0.0
    %738 = vmatprep.subr.mxu0 0.0
    %739 = vmatpush1.msra.mxu0 0.0
    %740 = vmatprep.subr.mxu0 0.0
    %741 = vmatpush1.msra.mxu0 0.0
    %742 = vmatprep.subr.mxu0 0.0
    %743 = vmatpush1.msra.mxu0 0.0
    %744 = vmatprep.subr.mxu0 0.0
    %745 = vmatpush1.msra.mxu0 0.0
    %746 = vmatprep.subr.mxu0 0.0
    %747 = vmatpush1.msra.mxu0 0.0
    %748 = vmatprep.subr.mxu0 0.0
    %749 = vmatpush1.msra.mxu0 0.0
    %750 = vmatprep.subr.mxu0 0.0
    %751 = vmatpush1.msra.mxu0 0.0
    %752 = vmatprep.subr.mxu0 0.0
    %753 = vmatpush1.msra.mxu0 0.0
    %754 = vmatprep.subr.mxu0 0.0
    %755 = vmatpush1.msra.mxu0 0.0
    %756 = vmatprep.subr.mxu0 0.0
    %757 = vmatpush1.msra.mxu0 0.0
    %758 = vmatprep.subr.mxu0 0.0
    %759 = vmatpush1.msra.mxu0 0.0
    %760 = vmatprep.subr.mxu0 0.0
    %761 = vmatpush1.msra.mxu0 0.0
    %762 = vmatprep.subr.mxu0 0.0
    %763 = vmatpush1.msra.mxu0 0.0
    %764 = vmatprep.subr.mxu0 0.0
    %765 = vmatpush1.msra.mxu0 0.0
    %766 = vmatprep.subr.mxu0 0.0
    %767 = vmatpush1.msra.mxu0 0.0
    %768 = vmatprep.subr.mxu0 0.0
    %769 = vmatpush1.msra.mxu0 0.0
    %770 = vmatprep.mubr.f32.mxu0 0.0
    %771 = vmatmul.mubr.f32.gmra.mrb[0].mxu0 %v704
    %v772 = vpop.f32.mrb[0].mxu0
    %v773 = vadd.f32 0.0, %v772
    %v774 = vpop.f32.mrb[0].mxu0
    %775 = vdwg.mxu0
    %v776 = vadd.f32 %v702, %v773
    %v777 = vtanh.pop %v776
    %s778 = scalar_lea.vmem [#allocation3], 56
    %v779 = vld [vmem:[%s778] sm:$0xff]
    %v781 = vsel %vm219, %v777, 0
    %783 = vmatprep.subr.mxu0 0.0
    %784 = vmatpush1.msra.mxu0 %v228
    %785 = vmatprep.subr.mxu0 0.0
    %786 = vmatpush1.msra.mxu0 %v229
    %787 = vmatprep.subr.mxu0 0.0
    %788 = vmatpush1.msra.mxu0 %v230
    %789 = vmatprep.subr.mxu0 0.0
    %790 = vmatpush1.msra.mxu0 %v231
    %791 = vmatprep.subr.mxu0 0.0
    %792 = vmatpush1.msra.mxu0 %v232
    %793 = vmatprep.subr.mxu0 0.0
    %794 = vmatpush1.msra.mxu0 %v233
    %795 = vmatprep.subr.mxu0 0.0
    %796 = vmatpush1.msra.mxu0 %v242
    %797 = vmatprep.subr.mxu0 0.0
    %798 = vmatpush1.msra.mxu0 0.0
    %799 = vmatprep.subr.mxu0 0.0
    %800 = vmatpush1.msra.mxu0 0.0
    %801 = vmatprep.subr.mxu0 0.0
    %802 = vmatpush1.msra.mxu0 0.0
    %803 = vmatprep.subr.mxu0 0.0
    %804 = vmatpush1.msra.mxu0 0.0
    %805 = vmatprep.subr.mxu0 0.0
    %806 = vmatpush1.msra.mxu0 0.0
    %807 = vmatprep.subr.mxu0 0.0
    %808 = vmatpush1.msra.mxu0 0.0
    %809 = vmatprep.subr.mxu0 0.0
    %810 = vmatpush1.msra.mxu0 0.0
    %811 = vmatprep.subr.mxu0 0.0
    %812 = vmatpush1.msra.mxu0 0.0
    %813 = vmatprep.subr.mxu0 0.0
    %814 = vmatpush1.msra.mxu0 0.0
    %815 = vmatprep.subr.mxu0 0.0
    %816 = vmatpush1.msra.mxu0 0.0
    %817 = vmatprep.subr.mxu0 0.0
    %818 = vmatpush1.msra.mxu0 0.0
    %819 = vmatprep.subr.mxu0 0.0
    %820 = vmatpush1.msra.mxu0 0.0
    %821 = vmatprep.subr.mxu0 0.0
    %822 = vmatpush1.msra.mxu0 0.0
    %823 = vmatprep.subr.mxu0 0.0
    %824 = vmatpush1.msra.mxu0 0.0
    %825 = vmatprep.subr.mxu0 0.0
    %826 = vmatpush1.msra.mxu0 0.0
    %827 = vmatprep.subr.mxu0 0.0
    %828 = vmatpush1.msra.mxu0 0.0
    %829 = vmatprep.subr.mxu0 0.0
    %830 = vmatpush1.msra.mxu0 0.0
    %831 = vmatprep.subr.mxu0 0.0
    %832 = vmatpush1.msra.mxu0 0.0
    %833 = vmatprep.subr.mxu0 0.0
    %834 = vmatpush1.msra.mxu0 0.0
    %835 = vmatprep.subr.mxu0 0.0
    %836 = vmatpush1.msra.mxu0 0.0
    %837 = vmatprep.subr.mxu0 0.0
    %838 = vmatpush1.msra.mxu0 0.0
    %839 = vmatprep.subr.mxu0 0.0
    %840 = vmatpush1.msra.mxu0 0.0
    %841 = vmatprep.subr.mxu0 0.0
    %842 = vmatpush1.msra.mxu0 0.0
    %843 = vmatprep.subr.mxu0 0.0
    %844 = vmatpush1.msra.mxu0 0.0
    %845 = vmatprep.subr.mxu0 0.0
    %846 = vmatpush1.msra.mxu0 0.0
    %847 = vmatprep.mubr.f32.mxu0 0.0
    %848 = vmatmul.mubr.f32.gmra.mrb[0].mxu0 %v781
    %v849 = vpop.f32.mrb[0].mxu0
    %v850 = vadd.f32 0.0, %v849
    %v851 = vpop.f32.mrb[0].mxu0
    %852 = vdwg.mxu0
    %v853 = vadd.f32 %v779, %v850
    %v854 = vtanh.pop %v853
    %855 = vst.msk [vmem:[#allocation2] sm:$0xff] %vm219, %v854
    // Predicated region
    $region42: #{tpu_custom_call.1} parent=1 // pred_check
      %p856 = pneg %p66
    $region43: #{tpu_custom_call.1} parent=1 // pred_check_branch
      %858 = sbr.rel (%p856) target = $region45
    $region44: #{tpu_custom_call.1} parent=1 // pred_region
      %v859 = vld [vmem:[%s4] sm:$0x1]
      %v861 = vlaneseq
      %v862 = vshrl.u32 %v861, 7
      %v863 = vsub.s32 0, %v862
      %v864 = vrot.slane %v859, %v863
      %v866 = vmul.f32 %v854, %v864
      %v867 = vsel %vm219, %v866, 0.0
      %868 = vadd.xlane.f32.xlu0 %v867
      %v869 = vpop.xlane.xlu0 %868
      %v870 = vld [vmem:[#allocation4] sm:$0x1]
      %v872 = vlaneseq
      %v873 = vshrl.u32 %v872, 7
      %v874 = vsub.s32 0, %v873
      %v875 = vrot.slane %v870, %v874
      %v877 = vadd.f32 %v869, %v875
      %vm878 = vcmask 7168
      %879 = vst.msk [vmem:[%s6] sm:$0xff] %vm878, %v877
    $region45: #{tpu_custom_call.1} parent=1 // pred_fallthru
      _
    // Predicated region
    $region46: #{tpu_custom_call.1} parent=1 // pred_check
      _
    $region47: #{tpu_custom_call.1} parent=1 // pred_check_branch
      %881 = sbr.rel (0) target = $region49
    $region48: #{tpu_custom_call.1} parent=1 // pred_region
      _
    $region49: #{tpu_custom_call.1} parent=1 // pred_fallthru
      _
    // Predicated region
    $region50: #{tpu_custom_call.1} parent=1 // pred_check
      _
    $region51: #{tpu_custom_call.1} parent=1 // pred_check_branch
      %883 = sbr.rel (0) target = $region53
    $region52: #{tpu_custom_call.1} parent=1 // pred_region
      _
    $region53: #{tpu_custom_call.1} parent=1 // pred_fallthru
      _
    %884 = vsyncpa [#allocation6], 1
    %885 = vsyncpa [#allocation8], 1

</llo_original>
